<compile_context>
chip_gen: v6e
topology: v6e:2x2x1
jax: 0.10.0
libtpu: 0.0.40
codegen_flags: <defaults>
</compile_context>

<pallas_src>
import functools

import jax
import jax.numpy as jnp
from jax.experimental import pallas as pl
from jax.experimental.pallas import tpu as pltpu

LANES = 128            # lane width of a vreg
MAX_TILE_ROWS = 1024   # sublane rows per tile (multiple of 8); 1024x128 f32 = 512 KiB
NUM_SPLITS = 2         # leading "parallel" grid axis (both TensorCores on v7x)


def _round_up(x, m):
    return ((x + m - 1) // m) * m


def _contrastive_loss_kernel(d_ref, y_ref, out_ref, acc_ref, *, eps):
    """Per-tile contrastive loss + partial-sum accumulation.

    d_ref, y_ref : (tile_rows, 128) f32 lane-dense tiles (distances, labels)
    out_ref      : (1, 8, 128) f32 per-split partial sum (scalar broadcast)
    acc_ref      : (tile_rows, 128) f32 VMEM accumulator, persists across the
                   inner "arbitrary" grid axis
    """
    i = pl.program_id(1)

    @pl.when(i == 0)
    def _init():
        acc_ref[...] = jnp.zeros_like(acc_ref)

    d = d_ref[...]
    y = y_ref[...]
    # (1 - y) * d^2 + y * clamp(eps - d, min=0)^2   -- pure VPU work in the hot loop
    hinge = jnp.maximum(jnp.float32(eps) - d, 0.0)
    acc_ref[...] += (1.0 - y) * d * d + y * hinge * hinge

    @pl.when(i == pl.num_programs(1) - 1)
    def _finalize():
        # One-time XLU reduce per split, deferred out of the hot loop.
        part = jnp.sum(acc_ref[...], axis=0, keepdims=True)   # (1, 128) sublane reduce
        part = jnp.sum(part, axis=1, keepdims=True)           # (1, 1)   lane reduce
        out_ref[...] = jnp.broadcast_to(part[None], out_ref.shape)


@functools.partial(jax.jit, static_argnames=("reduction", "eps"))
def contrastive_loss(distances, labels, *, reduction="mean", eps=1e-4):
    """Pallas implementation of ContrastiveLoss.forward.

    distances: (N, 1) float (or any shape with N elements, paired row-wise)
    labels:    (N, C) one-hot/logits (argmax over last dim) or (N, 1) scalar labels
    """
    assert reduction in ("mean", "sum")

    d_flat = distances.reshape(-1).astype(jnp.float32)
    n = d_flat.shape[0]

    if labels.shape[-1] > 1:
        # torch.argmax(labels, dim=-1).reshape(-1, 1): collapsed here (tiny
        # O(N*C) op in plain JAX) so the Pallas kernel streams N label values
        # instead of N*C, and both operands share a lane-dense layout.
        lab_flat = jnp.argmax(labels, axis=-1).reshape(-1).astype(jnp.float32)
    else:
        lab_flat = labels.reshape(-1).astype(jnp.float32)
    assert lab_flat.shape[0] == n, "labels/distances pair count mismatch"

    # Lane-dense layout: pad N up and view as (rows, 128).
    rows = max(_round_up(pl.cdiv(n, LANES), 8), 8)
    tile_rows = min(MAX_TILE_ROWS, rows)
    total_tiles = _round_up(pl.cdiv(rows, tile_rows), NUM_SPLITS)
    tiles_per_split = total_tiles // NUM_SPLITS
    padded_rows = total_tiles * tile_rows
    pad = padded_rows * LANES - n

    # Zero padding is loss-neutral: y=0, d=0 -> (1-0)*0^2 + 0*hinge^2 = 0.
    d2 = jnp.pad(d_flat, (0, pad)).reshape(padded_rows, LANES)
    y2 = jnp.pad(lab_flat, (0, pad)).reshape(padded_rows, LANES)

    def in_map(c, i):
        return (c * tiles_per_split + i, 0)

    partials = pl.pallas_call(
        functools.partial(_contrastive_loss_kernel, eps=float(eps)),
        out_shape=jax.ShapeDtypeStruct((NUM_SPLITS, 8, LANES), jnp.float32),
        grid_spec=pltpu.PrefetchScalarGridSpec(
            num_scalar_prefetch=0,
            grid=(NUM_SPLITS, tiles_per_split),
            in_specs=[
                pl.BlockSpec((tile_rows, LANES), in_map),   # distances
                pl.BlockSpec((tile_rows, LANES), in_map),   # labels (per-pair)
            ],
            out_specs=pl.BlockSpec((1, 8, LANES), lambda c, i: (c, 0, 0)),
            scratch_shapes=[pltpu.VMEM((tile_rows, LANES), jnp.float32)],
        ),
        compiler_params=pltpu.CompilerParams(
            dimension_semantics=("parallel", "arbitrary")),
    )(d2, y2)

    total = jnp.sum(partials[:, 0, 0])          # combine per-TC partial sums
    if reduction == "mean":
        total = total / jnp.float32(n)
    return total


if __name__ == "__main__":
    key = jax.random.PRNGKey(0)
    k_dist, k_lab = jax.random.split(key)

    batch = 8
    num_classes = 4
    eps = 1e-4

    distances = jax.random.uniform(k_dist, (batch, 1), dtype=jnp.float32)
    label_idx = jax.random.randint(k_lab, (batch,), 0, num_classes)
    labels_onehot = jax.nn.one_hot(label_idx, num_classes, dtype=jnp.float32)
    labels_binary = (label_idx % 2).astype(jnp.float32).reshape(batch, 1)

    # Case 1: (N, C) labels -> argmax path, mean reduction.
    out_mean = contrastive_loss(distances, labels_onehot, reduction="mean", eps=eps)
    # Case 2: (N, 1) scalar labels, sum reduction.
    out_sum = contrastive_loss(distances, labels_binary, reduction="sum", eps=eps)
    out_mean, out_sum = jax.block_until_ready((out_mean, out_sum))

    # Pure-JAX references mirroring the PyTorch forward exactly.
    lab1 = jnp.argmax(labels_onehot, axis=-1).reshape(-1, 1).astype(jnp.float32)
    loss1 = (1.0 - lab1) * distances ** 2 + lab1 * jnp.maximum(eps - distances, 0.0) ** 2
    ref_mean = jnp.mean(loss1)

    lab2 = labels_binary
    loss2 = (1.0 - lab2) * distances ** 2 + lab2 * jnp.maximum(eps - distances, 0.0) ** 2
    ref_sum = jnp.sum(loss2)

    assert jnp.allclose(out_mean, ref_mean, rtol=1e-5, atol=1e-6), (out_mean, ref_mean)
    assert jnp.allclose(out_sum, ref_sum, rtol=1e-5, atol=1e-6), (out_sum, ref_sum)
    print("KERNEL_OK")
</pallas_src>

<mosaic_0001>
module attributes {stable_mosaic.version = 11 : i64} {
  func.func @_contrastive_loss_kernel(%arg0: i32, %arg1: i32, %arg2: memref<8x128xf32, #tpu.memory_space<vmem>>, %arg3: memref<8x128xf32, #tpu.memory_space<vmem>>, %arg4: memref<1x8x128xf32, #tpu.memory_space<vmem>>, %arg5: memref<8x128xf32, #tpu.memory_space<vmem>>) attributes {dimension_semantics = [#tpu.dimension_semantics<parallel>, #tpu.dimension_semantics<arbitrary>], iteration_bounds = array<i64: 2, 1>, scalar_prefetch = 0 : i64, scratch_operands = 1 : i64, tpu.core_type = #tpu.core_type<tc>, window_params = [{transform_indices = @transform_0, window_bounds = array<i64: 8, 128>}, {transform_indices = @transform_1, window_bounds = array<i64: 8, 128>}, {transform_indices = @transform_2, window_bounds = array<i64: 1, 8, 128>}]} {
    %c0_i32 = arith.constant 0 : i32
    %0 = arith.cmpi eq, %arg1, %c0_i32 : i32
    %1 = arith.extui %0 : i1 to i32
    %c0_i32_0 = arith.constant 0 : i32
    %2 = arith.cmpi ne, %1, %c0_i32_0 : i32
    scf.if %2 {
      %cst_12 = arith.constant 0.000000e+00 : f32
      %22 = vector.broadcast %cst_12 : f32 to vector<8x128xf32>
      %c0_13 = arith.constant 0 : index
      %c0_14 = arith.constant 0 : index
      %23 = vector.load %arg5[%c0_13, %c0_14] : memref<8x128xf32, #tpu.memory_space<vmem>>, vector<8x128xf32>
      tpu.vector_store %arg5[%c0_13, %c0_14], %22 {strides = array<i32>} : memref<8x128xf32, #tpu.memory_space<vmem>>, vector<8x128xf32>,
    } else {
    }
    %c0 = arith.constant 0 : index
    %c0_1 = arith.constant 0 : index
    %3 = vector.load %arg2[%c0, %c0_1] : memref<8x128xf32, #tpu.memory_space<vmem>>, vector<8x128xf32>
    %c0_2 = arith.constant 0 : index
    %c0_3 = arith.constant 0 : index
    %4 = vector.load %arg3[%c0_2, %c0_3] : memref<8x128xf32, #tpu.memory_space<vmem>>, vector<8x128xf32>
    %cst = arith.constant 9.99999974E-5 : f32
    %5 = vector.broadcast %cst : f32 to vector<8x128xf32>
    %6 = arith.subf %5, %3 : vector<8x128xf32>
    %cst_4 = arith.constant 0.000000e+00 : f32
    %7 = vector.broadcast %cst_4 : f32 to vector<8x128xf32>
    %8 = arith.maximumf %6, %7 : vector<8x128xf32>
    %c0_5 = arith.constant 0 : index
    %c0_6 = arith.constant 0 : index
    %9 = vector.load %arg5[%c0_5, %c0_6] : memref<8x128xf32, #tpu.memory_space<vmem>>, vector<8x128xf32>
    %cst_7 = arith.constant 1.000000e+00 : f32
    %10 = vector.broadcast %cst_7 : f32 to vector<8x128xf32>
    %11 = arith.subf %10, %4 : vector<8x128xf32>
    %12 = arith.mulf %11, %3 : vector<8x128xf32>
    %13 = arith.mulf %12, %3 : vector<8x128xf32>
    %14 = arith.mulf %4, %8 : vector<8x128xf32>
    %15 = arith.mulf %14, %8 : vector<8x128xf32>
    %16 = arith.addf %13, %15 : vector<8x128xf32>
    %17 = arith.addf %9, %16 : vector<8x128xf32>
    %c0_8 = arith.constant 0 : index
    %c0_9 = arith.constant 0 : index
    %18 = vector.load %arg5[%c0_8, %c0_9] : memref<8x128xf32, #tpu.memory_space<vmem>>, vector<8x128xf32>
    tpu.vector_store %arg5[%c0_8, %c0_9], %17 {strides = array<i32>} : memref<8x128xf32, #tpu.memory_space<vmem>>, vector<8x128xf32>,
    %c0_i32_10 = arith.constant 0 : i32
    %19 = arith.cmpi eq, %arg1, %c0_i32_10 : i32
    %20 = arith.extui %19 : i1 to i32
    %c0_i32_11 = arith.constant 0 : i32
    %21 = arith.cmpi ne, %20, %c0_i32_11 : i32
    scf.if %21 {
      %c0_12 = arith.constant 0 : index
      %c0_13 = arith.constant 0 : index
      %22 = vector.load %arg5[%c0_12, %c0_13] : memref<8x128xf32, #tpu.memory_space<vmem>>, vector<8x128xf32>
      %cst_14 = arith.constant dense<0.000000e+00> : vector<128xf32>
      %23 = vector.multi_reduction <add>, %22, %cst_14 [0] : vector<8x128xf32> to vector<128xf32>
      %24 = vector.shape_cast %23 : vector<128xf32> to vector<1x128xf32>
      %cst_15 = arith.constant dense<0.000000e+00> : vector<1xf32>
      %25 = vector.multi_reduction <add>, %24, %cst_15 [1] : vector<1x128xf32> to vector<1xf32>
      %26 = vector.shape_cast %25 : vector<1xf32> to vector<1x1xf32>
      %27 = vector.shape_cast %26 : vector<1x1xf32> to vector<1x1x1xf32>
      %28 = vector.shape_cast %27 : vector<1x1x1xf32> to vector<1x1x1xf32>
      %29 = vector.broadcast %28 : vector<1x1x1xf32> to vector<1x8x128xf32>
      %c0_16 = arith.constant 0 : index
      %c0_17 = arith.constant 0 : index
      %c0_18 = arith.constant 0 : index
      %30 = vector.load %arg4[%c0_16, %c0_17, %c0_18] : memref<1x8x128xf32, #tpu.memory_space<vmem>>, vector<1x8x128xf32>
      tpu.vector_store %arg4[%c0_16, %c0_17, %c0_18], %29 {strides = array<i32>} : memref<1x8x128xf32, #tpu.memory_space<vmem>>, vector<1x8x128xf32>,
    } else {
    }
    return
  }
  func.func @transform_0(%arg0: i32, %arg1: i32) -> (i32, i32) {
    %c1_i32 = arith.constant 1 : i32
    %0 = arith.muli %arg0, %c1_i32 : i32
    %1 = arith.addi %0, %arg1 : i32
    %c0_i32 = arith.constant 0 : i32
    %c0_i32_0 = arith.constant 0 : i32
    return %1, %c0_i32 : i32, i32
  }
  func.func @transform_1(%arg0: i32, %arg1: i32) -> (i32, i32) {
    %c1_i32 = arith.constant 1 : i32
    %0 = arith.muli %arg0, %c1_i32 : i32
    %1 = arith.addi %0, %arg1 : i32
    %c0_i32 = arith.constant 0 : i32
    %c0_i32_0 = arith.constant 0 : i32
    return %1, %c0_i32 : i32, i32
  }
  func.func @transform_2(%arg0: i32, %arg1: i32) -> (i32, i32, i32) {
    %c0_i32 = arith.constant 0 : i32
    %c0_i32_0 = arith.constant 0 : i32
    %c0_i32_1 = arith.constant 0 : i32
    return %arg0, %c0_i32, %c0_i32_0 : i32, i32, i32
  }
}

</mosaic_0001>

<llo_original>
// kernel: contrastive_loss.1
$region0: #{contrastive_loss.1}
  #allocation0 [shape = 'u32[]', space=smem, size = 0x4, offset = 0x4, fixed_abs, tag = 'smem constant byte address 0x4 - core index']
  #allocation1 [shape = 'u32[144,128]{1,0:T(1,128)}', space=vmem, size = 0x12000, scoped, tag = 'internal scratch']
  #allocation2 [shape = 'f32[8,128]{1,0:T(8,128)}', space=vmem, size = 0x1000, scoped, tag = 'scratch operand']
  %s0 = inlined_call_operand.vmem [shape: f32[16,128], index: 0, kind: input, shape index: {}]
  %s1 = inlined_call_operand.vmem [shape: f32[16,128], index: 1, kind: input, shape index: {}]
  %s2 = inlined_call_operand.vmem [shape: f32[2,8,128], index: 2, kind: output, shape index: {}]
  %s3 = sld [smem:[#allocation0]]
  $region49: #{contrastive_loss.1} parent=0
    _
  %s5 = ssub.s32 1, %s3
  %s6 = scalar_select 0, %s5, %s3
  loop: start=0, step=1, limit=4
  $region2: #{contrastive_loss.1} parent=0 // loop_pre_header
    _
  $region3: #{contrastive_loss.1} parent=0 // loop_header
    %s8 = sphi 0, %s12
    %p9 = scmp.ge.s32.totalorder %s8, 4
    %s15 = sphi 0, %s27
    %s16 = sphi 0, %s23
    %s17 = sphi 0, %s15
    %s18 = sphi 0, %s16
    %s19 = sphi 0, %s17
    %s20 = sphi 0, %s18
    %s32 = sphi 0, %s34
    %s35 = sphi 0, %s32
    %s36 = sphi 0, %s35
    %s52 = sphi 0, %s36
    %s60 = sphi 0, %s62
    %s63 = sphi 0, %s60
    %s64 = sphi 0, %s63
    %s80 = sphi 0, %s64
    %s86 = sphi 0, %s88
    %s89 = sphi 0, %s86
    %s90 = sphi 0, %s89
    %s106 = sphi 0, %s90
  $region4: #{contrastive_loss.1} parent=0 // loop_header_branch
    %11 = sbr.rel (%p9) target = $region8
  $region5: #{contrastive_loss.1} parent=0 // loop_body
    %s13 = ssub.s32 %s8, 1
    %s14 = ssub.s32 %s8, 2
    %s21 = sadd.s32 1, %s16
    %p22 = scmp.ge.s32.totalorder %s21, 1
    %s23 = scalar_select %p22, 0, %s21
    %s24 = sadd.s32 1, %s15
    %s25 = scalar_select %p22, %s24, %s15
    %p26 = scmp.ge.s32.totalorder %s25, 2
    %s27 = scalar_select %p26, 0, %s25
    %s28 = sadd.s32 %s15, %s16
    %s29 = sadd.s32 %s27, %s23
    %s30 = ssub.s32 %s28, %s29
    %p31 = scmp.eq.s32.totalorder %s30, 0
    %s33 = sadd.s32 %s32, 1
    %s34 = scalar_select %p31, %s32, %s33
    %p37 = pneg %p31
    %p38 = scmp.eq.s32.totalorder %s8, 1
    %p39 = por %p37, %p38
    %p40 = scmp.ne.s32.totalorder %s32, %s35
    %p41 = scmp.eq.s32.totalorder %s8, 0
    %p42 = por %p40, %p41
    %p43 = scmp.ne.s32.totalorder %s32, %s35
    %p44 = scmp.eq.s32.totalorder %s13, 1
    %p45 = por %p43, %p44
    %p46 = scmp.ne.s32.totalorder %s35, %s36
    %p47 = scmp.eq.s32.totalorder %s13, 0
    %p48 = por %p46, %p47
    %p49 = scmp.ne.s32.totalorder %s35, %s36
    %p50 = scmp.eq.s32.totalorder %s14, 1
    %p51 = por %p49, %p50
    %p53 = scmp.ne.s32.totalorder %s36, %s52
    %p54 = scmp.eq.s32.totalorder %s14, 0
    %p55 = por %p53, %p54
    %s56 = sadd.s32 %s15, %s16
    %s57 = sadd.s32 %s27, %s23
    %s58 = ssub.s32 %s56, %s57
    %p59 = scmp.eq.s32.totalorder %s58, 0
    %s61 = sadd.s32 %s60, 1
    %s62 = scalar_select %p59, %s60, %s61
    %p65 = pneg %p59
    %p66 = scmp.eq.s32.totalorder %s8, 1
    %p67 = por %p65, %p66
    %p68 = scmp.ne.s32.totalorder %s60, %s63
    %p69 = scmp.eq.s32.totalorder %s8, 0
    %p70 = por %p68, %p69
    %p71 = scmp.ne.s32.totalorder %s60, %s63
    %p72 = scmp.eq.s32.totalorder %s13, 1
    %p73 = por %p71, %p72
    %p74 = scmp.ne.s32.totalorder %s63, %s64
    %p75 = scmp.eq.s32.totalorder %s13, 0
    %p76 = por %p74, %p75
    %p77 = scmp.ne.s32.totalorder %s63, %s64
    %p78 = scmp.eq.s32.totalorder %s14, 1
    %p79 = por %p77, %p78
    %p81 = scmp.ne.s32.totalorder %s64, %s80
    %p82 = scmp.eq.s32.totalorder %s14, 0
    %p83 = por %p81, %p82
    %s84 = ssub.s32 %s15, %s27
    %p85 = scmp.eq.s32.totalorder %s84, 0
    %s87 = sadd.s32 %s86, 1
    %s88 = scalar_select %p85, %s86, %s87
    %p91 = pneg %p85
    %p92 = scmp.eq.s32.totalorder %s8, 1
    %p93 = por %p91, %p92
    %p94 = scmp.ne.s32.totalorder %s86, %s89
    %p95 = scmp.eq.s32.totalorder %s8, 0
    %p96 = por %p94, %p95
    %p97 = scmp.ne.s32.totalorder %s86, %s89
    %p98 = scmp.eq.s32.totalorder %s13, 1
    %p99 = por %p97, %p98
    %p100 = scmp.ne.s32.totalorder %s89, %s90
    %p101 = scmp.eq.s32.totalorder %s13, 0
    %p102 = por %p100, %p101
    %p103 = scmp.ne.s32.totalorder %s89, %s90
    %p104 = scmp.eq.s32.totalorder %s14, 1
    %p105 = por %p103, %p104
    %p107 = scmp.ne.s32.totalorder %s90, %s106
    %p108 = scmp.eq.s32.totalorder %s14, 0
    %p109 = por %p107, %p108
    %p110 = scmp.le.s32.totalorder 1, %s8
    %p111 = scmp.lt.s32.totalorder %s8, 3
    %p112 = pnand %p110, %p111
    %p113 = pneg %p112
    // Predicated region
    $region9: #{contrastive_loss.1} parent=5 // pred_check
      _
    $region10: #{contrastive_loss.1} parent=5 // pred_check_branch
      %115 = sbr.rel (%p112) target = $region12
    $region11: #{contrastive_loss.1} parent=5 // pred_region
      %s116 = ssub.s32 %s8, 1
    $region12: #{contrastive_loss.1} parent=5 // pred_fallthru
      _
    %p117 = scmp.lt.s32.totalorder %s8, 2
    // Predicated region
    $region13: #{contrastive_loss.1} parent=5 // pred_check
      %p118 = pneg %p117
    $region14: #{contrastive_loss.1} parent=5 // pred_check_branch
      %120 = sbr.rel (%p118) target = $region16
    $region15: #{contrastive_loss.1} parent=5 // pred_region
      // Predicated region
      $region17: #{contrastive_loss.1} parent=15 // pred_check
        %p121 = pneg %p42
      $region18: #{contrastive_loss.1} parent=15 // pred_check_branch
        %123 = sbr.rel (%p121) target = $region20
      $region19: #{contrastive_loss.1} parent=15 // pred_region
        %s124 = sadd.s32 %s15, %s16
        %p125 = scmp.lt.s32.totalorder %s124, 1
        %s126 = scalar_select %p125, %s124, 1
        %s127 = smul.addr %s126, 8
        %s128 = scalar_lea.vmem %s0, %s127
        %s129 = sadd.s32 %s15, %s16
      $region20: #{contrastive_loss.1} parent=15 // pred_fallthru
        _
      // Predicated region
      $region21: #{contrastive_loss.1} parent=15 // pred_check
        %p130 = pneg %p70
      $region22: #{contrastive_loss.1} parent=15 // pred_check_branch
        %132 = sbr.rel (%p130) target = $region24
      $region23: #{contrastive_loss.1} parent=15 // pred_region
        %s133 = sadd.s32 %s15, %s16
        %p134 = scmp.lt.s32.totalorder %s133, 1
        %s135 = scalar_select %p134, %s133, 1
        %s136 = smul.addr %s135, 8
        %s137 = scalar_lea.vmem %s1, %s136
        %s138 = sadd.s32 %s15, %s16
      $region24: #{contrastive_loss.1} parent=15 // pred_fallthru
        _
    $region16: #{contrastive_loss.1} parent=5 // pred_fallthru
      _
    %p139 = scmp.le.s32.totalorder 1, %s8
    %p140 = scmp.lt.s32.totalorder %s8, 3
    %p141 = pnand %p139, %p140
    %p142 = pneg %p141
    // Predicated region
    $region25: #{contrastive_loss.1} parent=5 // pred_check
      _
    $region26: #{contrastive_loss.1} parent=5 // pred_check_branch
      %144 = sbr.rel (%p141) target = $region28
    $region27: #{contrastive_loss.1} parent=5 // pred_region
      %s145 = ssub.s32 %s8, 1
      %s146 = sadd.s32 %s17, %s18
      %p147 = scmp.lt.s32.totalorder %s146, 1
      %s148 = scalar_select %p147, %s146, 1
      %s149 = smul.addr %s148, 8
      %s150 = scalar_lea.vmem %s0, %s149
      %p151 = pneg %p48
      %p152 = pneg %p45
      %s153 = sadd.s32 %s17, %s18
      %p154 = scmp.lt.s32.totalorder %s153, 1
      %s155 = scalar_select %p154, %s153, 1
      %s156 = smul.addr %s155, 8
      %s157 = scalar_lea.vmem %s1, %s156
      %p158 = pneg %p76
      %p159 = pneg %p73
      %p160 = pneg %p102
      %p161 = pneg %p99
      %p162 = scmp.lt.s32.totalorder %s17, 1
      %s163 = scalar_select %p162, %s17, 1
      %s164 = smul.addr %s163, 8
      %s165 = scalar_lea.vmem %s2, %s164
      %s166 = sadd.s32 %s17, %s18
      %p167 = scmp.lt.s32.totalorder %s166, 1
      %s168 = scalar_select %p167, %s166, 1
      %s169 = smul.addr %s168, 8
      %s170 = scalar_lea.vmem %s0, %s169
      %s171 = sadd.s32 %s17, %s18
      %s172 = sadd.s32 %s17, %s18
      %p173 = scmp.lt.s32.totalorder %s172, 1
      %s174 = scalar_select %p173, %s172, 1
      %s175 = smul.addr %s174, 8
      %s176 = scalar_lea.vmem %s1, %s175
      %s177 = sadd.s32 %s17, %s18
      %p178 = scmp.lt.s32.totalorder %s17, 1
      %s179 = scalar_select %p178, %s17, 1
      %s180 = smul.addr %s179, 8
      %s181 = scalar_lea.vmem %s2, %s180
      %p182 = scmp.eq.s32.totalorder %s18, 0
      // Predicated region
      $region29: #{contrastive_loss.1} parent=27 // pred_check
        %p183 = pneg %p182
      $region30: #{contrastive_loss.1} parent=27 // pred_check_branch
        %185 = sbr.rel (%p183) target = $region32
      $region31: #{contrastive_loss.1} parent=27 // pred_region
        %186 = vst [vmem:[#allocation2] sm:$0xff] 0.0
      $region32: #{contrastive_loss.1} parent=27 // pred_fallthru
        _
      %v187 = vld [vmem:[%s170] sm:$0xff]
      %v188 = vld [vmem:[%s176] sm:$0xff]
      %v189 = vsub.f32 0.0001, %v187
      %v190 = vmax.f32 %v189, 0.0
      %v191 = vld [vmem:[#allocation2] sm:$0xff]
      %v192 = vsub.f32 1.0, %v188
      %v193 = vmul.f32 %v192, %v187
      %v194 = vmul.f32 %v193, %v187
      %v195 = vmul.f32 %v188, %v190
      %v196 = vmul.f32 %v195, %v190
      %v197 = vadd.f32 %v194, %v196
      %v198 = vadd.f32 %v191, %v197
      %199 = vst [vmem:[#allocation2] sm:$0xff] %v198
      // Predicated region
      $region33: #{contrastive_loss.1} parent=27 // pred_check
        %p200 = pneg %p182
      $region34: #{contrastive_loss.1} parent=27 // pred_check_branch
        %202 = sbr.rel (%p200) target = $region36
      $region35: #{contrastive_loss.1} parent=27 // pred_region
        %v203 = vld [vmem:[#allocation2] sm:$0xff]
        %v204 = vrot.slane %v203, 4
        %v205 = vadd.f32 %v203, %v204
        %v206 = vrot.slane %v205, 2
        %v207 = vadd.f32 %v205, %v206
        %v208 = vrot.slane %v207, 1
        %v209 = vadd.f32 %v207, %v208
        %210 = vadd.xlane.f32.xlu0 %v209
        %v211 = vpop.xlane.xlu0 %210
        %212 = vst [vmem:[%s181] sm:$0xff] %v211
      $region36: #{contrastive_loss.1} parent=27 // pred_fallthru
        _
      %p213 = scmp.lt.s32.totalorder %s17, 1
      %s214 = scalar_select %p213, %s17, 1
      %s215 = smul.addr %s214, 8
      %s216 = scalar_lea.vmem %s2, %s215
      // Predicated region
      $region37: #{contrastive_loss.1} parent=27 // pred_check
        %p217 = pneg %p99
      $region38: #{contrastive_loss.1} parent=27 // pred_check_branch
        %219 = sbr.rel (%p217) target = $region40
      $region39: #{contrastive_loss.1} parent=27 // pred_region
        _
      $region40: #{contrastive_loss.1} parent=27 // pred_fallthru
        _
    $region28: #{contrastive_loss.1} parent=5 // pred_fallthru
      _
    %p220 = scmp.le.s32.totalorder 2, %s8
    // Predicated region
    $region41: #{contrastive_loss.1} parent=5 // pred_check
      %p221 = pneg %p220
    $region42: #{contrastive_loss.1} parent=5 // pred_check_branch
      %223 = sbr.rel (%p221) target = $region44
    $region43: #{contrastive_loss.1} parent=5 // pred_region
      %s224 = ssub.s32 %s8, 2
      // Predicated region
      $region45: #{contrastive_loss.1} parent=43 // pred_check
        %p225 = pneg %p105
      $region46: #{contrastive_loss.1} parent=43 // pred_check_branch
        %227 = sbr.rel (%p225) target = $region48
      $region47: #{contrastive_loss.1} parent=43 // pred_region
        %p228 = scmp.lt.s32.totalorder %s19, 1
        %s229 = scalar_select %p228, %s19, 1
        %s230 = smul.addr %s229, 8
        %s231 = scalar_lea.vmem %s2, %s230
      $region48: #{contrastive_loss.1} parent=43 // pred_fallthru
        _
    $region44: #{contrastive_loss.1} parent=5 // pred_fallthru
      _
  $region6: #{contrastive_loss.1} parent=0 // loop_footer
    %s12 = sadd.s32 1, %s8
  $region7: #{contrastive_loss.1} parent=0 // loop_footer_branch
    %7 = sbr.rel target = $region3
  $region8: #{contrastive_loss.1} parent=0 // loop_exit
    _

</llo_original>
